<compile_context>
chip_gen: v7x
topology: tpu7x:2x2x1
jax: 0.10.0
libtpu: 0.0.40
codegen_flags: <defaults>
</compile_context>

<pallas_src>
import jax
import jax.numpy as jnp
from jax.experimental import pallas as pl
from jax.experimental.pallas import tpu as pltpu

N_EMBD = 64


def head_kernel(x_ref, wq_ref, wk_ref, wv_ref, o_ref):
    """One grid step == one attention head.

    x_ref : (B, T, C)  full activations, resident in VMEM across grid steps
    wq_ref: (C, H)     this head's query weight (pre-transposed, C**-0.5 folded in)
    wk_ref: (C, H)     this head's key weight   (pre-transposed)
    wv_ref: (C, H)     this head's value weight (pre-transposed)
    o_ref : (B, T, H)  this head's output slab
    """
    B, T, C = x_ref.shape
    H = wq_ref.shape[1]

    x2 = x_ref[...].reshape(B * T, C)          # leading-dim merge (free layout)

    # Three separate (C, H) projections: lane-aligned operands, no in-kernel
    # slicing of a fused qkv tensor (16-wide lane slices would hit the XLU).
    q = jnp.dot(x2, wq_ref[...], preferred_element_type=jnp.float32).reshape(B, T, H)
    k = jnp.dot(x2, wk_ref[...], preferred_element_type=jnp.float32).reshape(B, T, H)
    v = jnp.dot(x2, wv_ref[...], preferred_element_type=jnp.float32).reshape(B, T, H)

    # Attention scores; the C**-0.5 scale is already folded into Wq.
    # Last-dim contraction -> no in-kernel transpose of k.
    wei = jnp.einsum('bth,bsh->bts', q, k,
                     preferred_element_type=jnp.float32)              # (B, T, T)

    # Numerically-stable softmax; normalization folded in AFTER wei @ v using
    # the (exact) EUP reciprocal — free slot next to the MXU/VPU work.
    wei = wei - jnp.max(wei, axis=-1, keepdims=True)
    p = jnp.exp(wei)                                                   # (B, T, T)
    inv = pl.reciprocal(jnp.sum(p, axis=-1, keepdims=True), approx=False)

    # TODO(synk): training-mode dropout would be applied to `p` here.
    out = jnp.einsum('bts,bsh->bth', p, v,
                     preferred_element_type=jnp.float32)               # (B, T, H)
    o_ref[...] = (out * inv).astype(o_ref.dtype)


def prepare_head_weights(wq, wk, wv, n_embd=N_EMBD):
    """One-time (model-load time) weight layout plumbing.

    wq/wk/wv: (NH, H, C) stacked nn.Linear weights (PyTorch layout, y = x @ W.T).
    Returns (NH, C, H) operands; the softmax scale C**-0.5 is folded into Wq.
    """
    scale = float(n_embd) ** -0.5
    wq_t = jnp.transpose(wq, (0, 2, 1)) * scale     # (NH, C, H)
    wk_t = jnp.transpose(wk, (0, 2, 1))             # (NH, C, H)
    wv_t = jnp.transpose(wv, (0, 2, 1))             # (NH, C, H)
    return wq_t, wk_t, wv_t


@jax.jit
def heads_forward(x, wq_t, wk_t, wv_t):
    """Run NH independent `Head` forwards in ONE pallas_call.

    x: (B, T, C) float32;  wq_t/wk_t/wv_t: (NH, C, H) from prepare_head_weights.
    Returns (NH, B, T, H).  NH=1 is exactly the single Head module.
    """
    B, T, C = x.shape
    NH, _, H = wq_t.shape

    flops = NH * (2 * B * T * C * 3 * H        # q/k/v projections
                  + 2 * 2 * B * T * T * H)     # scores + weighted sum
    transcendentals = NH * (B * T * T + B * T)  # exp + reciprocal
    bytes_accessed = 4 * (B * T * C + 3 * NH * C * H + NH * B * T * H)

    return pl.pallas_call(
        head_kernel,
        out_shape=jax.ShapeDtypeStruct((NH, B, T, H), x.dtype),
        grid=(NH,),
        in_specs=[
            # x: full array, same block every step -> stays resident in VMEM.
            pl.BlockSpec((B, T, C), lambda h: (0, 0, 0)),
            # Per-head weights: leading head dim squeezed, (C, H) full-extent
            # blocks (lane/sublane constraint satisfied by full-dim blocks).
            pl.BlockSpec((None, C, H), lambda h: (h, 0, 0)),
            pl.BlockSpec((None, C, H), lambda h: (h, 0, 0)),
            pl.BlockSpec((None, C, H), lambda h: (h, 0, 0)),
        ],
        out_specs=pl.BlockSpec((None, B, T, H), lambda h: (h, 0, 0, 0)),
        compiler_params=pltpu.CompilerParams(
            dimension_semantics=("parallel",)),   # v7x: heads across both TCs
        cost_estimate=pl.CostEstimate(
            flops=flops,
            transcendentals=transcendentals,
            bytes_accessed=bytes_accessed),
    )(x, wq_t, wk_t, wv_t)


def reference_head(x, wk, wq, wv):
    """Pure-JAX reference matching the PyTorch Head.forward (eval mode)."""
    C = x.shape[-1]
    k = x @ wk.T
    q = x @ wq.T
    v = x @ wv.T
    wei = (q @ jnp.swapaxes(k, -2, -1)) * (C ** -0.5)
    wei = jax.nn.softmax(wei, axis=-1)
    return wei @ v


if __name__ == "__main__":
    B, T, C = 2, 8, N_EMBD
    head_size = 16
    num_heads = 4        # the source model's MultiHead: n_embd // head_size

    key = jax.random.PRNGKey(0)
    kx, kw = jax.random.split(key)

    x = jax.random.normal(kx, (B, T, C), dtype=jnp.float32)
    # Stacked nn.Linear(n_embd, head_size, bias=False) weights: (NH, H, C).
    w = jax.random.normal(kw, (3, num_heads, head_size, C),
                          dtype=jnp.float32) * (C ** -0.5)
    wq, wk, wv = w[0], w[1], w[2]

    # --- one-time weight preparation (model-load time, not per forward) ---
    wq_t, wk_t, wv_t = prepare_head_weights(wq, wk, wv, n_embd=C)

    # 1) Single Head — exact module semantics (NH = 1).
    out1 = heads_forward(x, wq_t[:1], wk_t[:1], wv_t[:1])
    out1 = jax.block_until_ready(out1)[0]                       # (B, T, H)
    ref1 = reference_head(x, wk[0], wq[0], wv[0])
    assert out1.shape == (B, T, head_size)
    assert jnp.allclose(out1, ref1, atol=1e-4, rtol=1e-4)

    # 2) All four heads fused into one pallas_call (amortizes launch overhead
    #    ~4x; parallel grid axis engages both v7x TensorCores).
    out4 = heads_forward(x, wq_t, wk_t, wv_t)
    out4 = jax.block_until_ready(out4)                          # (NH, B, T, H)
    ref4 = jnp.stack([reference_head(x, wk[h], wq[h], wv[h])
                      for h in range(num_heads)])
    assert out4.shape == (num_heads, B, T, head_size)
    assert jnp.allclose(out4, ref4, atol=1e-4, rtol=1e-4)

    print("KERNEL_OK")
</pallas_src>

<mosaic_0001>
module attributes {stable_mosaic.version = 11 : i64} {
  func.func @head_kernel(%arg0: i32, %arg1: memref<2x8x64xf32, #tpu.memory_space<vmem>>, %arg2: memref<1x64x16xf32, #tpu.memory_space<vmem>>, %arg3: memref<1x64x16xf32, #tpu.memory_space<vmem>>, %arg4: memref<1x64x16xf32, #tpu.memory_space<vmem>>, %arg5: memref<1x2x8x16xf32, #tpu.memory_space<vmem>>) attributes {dimension_semantics = [#tpu.dimension_semantics<parallel>], iteration_bounds = array<i64: 1>, scalar_prefetch = 0 : i64, scratch_operands = 0 : i64, tpu.core_type = #tpu.core_type<tc>, window_params = [{pipeline_mode = #tpu.pipeline_mode<synchronous>, transform_indices = @transform_0, window_bounds = array<i64: 2, 8, 64>}, {transform_indices = @transform_1, window_bounds = array<i64: 1, 64, 16>}, {transform_indices = @transform_2, window_bounds = array<i64: 1, 64, 16>}, {transform_indices = @transform_3, window_bounds = array<i64: 1, 64, 16>}, {transform_indices = @transform_4, window_bounds = array<i64: 1, 2, 8, 16>}]} {
    %c0 = arith.constant 0 : index
    %c0_0 = arith.constant 0 : index
    %c0_1 = arith.constant 0 : index
    %0 = vector.load %arg1[%c0, %c0_0, %c0_1] : memref<2x8x64xf32, #tpu.memory_space<vmem>>, vector<2x8x64xf32>
    %1 = vector.shape_cast %0 : vector<2x8x64xf32> to vector<16x64xf32>
    %c0_2 = arith.constant 0 : index
    %c0_3 = arith.constant 0 : index
    %c0_4 = arith.constant 0 : index
    %2 = vector.load %arg2[%c0_2, %c0_3, %c0_4] : memref<1x64x16xf32, #tpu.memory_space<vmem>>, vector<1x64x16xf32>
    %3 = vector.shape_cast %2 : vector<1x64x16xf32> to vector<64x16xf32>
    %cst = arith.constant dense<0.000000e+00> : vector<16x16xf32>
    %4 = tpu.matmul %1, %3, %cst {dimension_numbers = #tpu.dot_dimension_numbers<[1], [0], [0], [1], [0, 0, 1, 1], [], []>} : vector<16x64xf32>, vector<64x16xf32>, vector<16x16xf32> -> vector<16x16xf32>
    %5 = vector.shape_cast %4 : vector<16x16xf32> to vector<2x8x16xf32>
    %c0_5 = arith.constant 0 : index
    %c0_6 = arith.constant 0 : index
    %c0_7 = arith.constant 0 : index
    %6 = vector.load %arg3[%c0_5, %c0_6, %c0_7] : memref<1x64x16xf32, #tpu.memory_space<vmem>>, vector<1x64x16xf32>
    %7 = vector.shape_cast %6 : vector<1x64x16xf32> to vector<64x16xf32>
    %cst_8 = arith.constant dense<0.000000e+00> : vector<16x16xf32>
    %8 = tpu.matmul %1, %7, %cst_8 {dimension_numbers = #tpu.dot_dimension_numbers<[1], [0], [0], [1], [0, 0, 1, 1], [], []>} : vector<16x64xf32>, vector<64x16xf32>, vector<16x16xf32> -> vector<16x16xf32>
    %9 = vector.shape_cast %8 : vector<16x16xf32> to vector<2x8x16xf32>
    %c0_9 = arith.constant 0 : index
    %c0_10 = arith.constant 0 : index
    %c0_11 = arith.constant 0 : index
    %10 = vector.load %arg4[%c0_9, %c0_10, %c0_11] : memref<1x64x16xf32, #tpu.memory_space<vmem>>, vector<1x64x16xf32>
    %11 = vector.shape_cast %10 : vector<1x64x16xf32> to vector<64x16xf32>
    %cst_12 = arith.constant dense<0.000000e+00> : vector<16x16xf32>
    %12 = tpu.matmul %1, %11, %cst_12 {dimension_numbers = #tpu.dot_dimension_numbers<[1], [0], [0], [1], [0, 0, 1, 1], [], []>} : vector<16x64xf32>, vector<64x16xf32>, vector<16x16xf32> -> vector<16x16xf32>
    %13 = vector.shape_cast %12 : vector<16x16xf32> to vector<2x8x16xf32>
    "tpu.trace_start"() <{level = 10 : i32, message = "bth,bsh->bts"}> : () -> ()
    %cst_13 = arith.constant dense<0.000000e+00> : vector<2x8x8xf32>
    %14 = tpu.matmul %5, %9, %cst_13 {dimension_numbers = #tpu.dot_dimension_numbers<[2], [2], [1], [1], [0, 0, 0, 1, 1, 1], [0], [0]>} : vector<2x8x16xf32>, vector<2x8x16xf32>, vector<2x8x8xf32> -> vector<2x8x8xf32>
    "tpu.trace_stop"() : () -> ()
    %cst_14 = arith.constant dense<0xFF800000> : vector<2x8xf32>
    %15 = vector.multi_reduction <maximumf>, %14, %cst_14 [2] : vector<2x8x8xf32> to vector<2x8xf32>
    %16 = vector.shape_cast %15 : vector<2x8xf32> to vector<2x8x1xf32>
    %17 = vector.broadcast %16 : vector<2x8x1xf32> to vector<2x8x8xf32>
    %18 = arith.subf %14, %17 : vector<2x8x8xf32>
    %19 = math.exp %18 : vector<2x8x8xf32>
    %cst_15 = arith.constant dense<0.000000e+00> : vector<2x8xf32>
    %20 = vector.multi_reduction <add>, %19, %cst_15 [2] : vector<2x8x8xf32> to vector<2x8xf32>
    %21 = vector.shape_cast %20 : vector<2x8xf32> to vector<2x8x1xf32>
    %22 = tpu.reciprocal %21 : vector<2x8x1xf32> -> vector<2x8x1xf32>
    "tpu.trace_start"() <{level = 10 : i32, message = "bts,bsh->bth"}> : () -> ()
    %cst_16 = arith.constant dense<0.000000e+00> : vector<2x8x16xf32>
    %23 = tpu.matmul %19, %13, %cst_16 {dimension_numbers = #tpu.dot_dimension_numbers<[2], [1], [1], [2], [0, 0, 0, 1, 1, 2], [0], [0]>} : vector<2x8x8xf32>, vector<2x8x16xf32>, vector<2x8x16xf32> -> vector<2x8x16xf32>
    "tpu.trace_stop"() : () -> ()
    %24 = vector.broadcast %22 : vector<2x8x1xf32> to vector<2x8x16xf32>
    %25 = arith.mulf %23, %24 : vector<2x8x16xf32>
    %c0_17 = arith.constant 0 : index
    %c0_18 = arith.constant 0 : index
    %c0_19 = arith.constant 0 : index
    %c0_20 = arith.constant 0 : index
    %26 = vector.load %arg5[%c0_17, %c0_18, %c0_19, %c0_20] : memref<1x2x8x16xf32, #tpu.memory_space<vmem>>, vector<1x2x8x16xf32>
    %27 = vector.shape_cast %26 : vector<1x2x8x16xf32> to vector<2x8x16xf32>
    %28 = vector.shape_cast %25 : vector<2x8x16xf32> to vector<1x2x8x16xf32>
    tpu.vector_store %arg5[%c0_17, %c0_18, %c0_19, %c0_20], %28 {strides = array<i32>} : memref<1x2x8x16xf32, #tpu.memory_space<vmem>>, vector<1x2x8x16xf32>,
    return
  }
  func.func @transform_0(%arg0: i32) -> (i32, i32, i32) {
    %c0_i32 = arith.constant 0 : i32
    %c0_i32_0 = arith.constant 0 : i32
    %c0_i32_1 = arith.constant 0 : i32
    %c0_i32_2 = arith.constant 0 : i32
    return %c0_i32, %c0_i32_0, %c0_i32_1 : i32, i32, i32
  }
  func.func @transform_1(%arg0: i32) -> (i32, i32, i32) {
    %c0_i32 = arith.constant 0 : i32
    %c0_i32_0 = arith.constant 0 : i32
    %c0_i32_1 = arith.constant 0 : i32
    return %arg0, %c0_i32, %c0_i32_0 : i32, i32, i32
  }
  func.func @transform_2(%arg0: i32) -> (i32, i32, i32) {
    %c0_i32 = arith.constant 0 : i32
    %c0_i32_0 = arith.constant 0 : i32
    %c0_i32_1 = arith.constant 0 : i32
    return %arg0, %c0_i32, %c0_i32_0 : i32, i32, i32
  }
  func.func @transform_3(%arg0: i32) -> (i32, i32, i32) {
    %c0_i32 = arith.constant 0 : i32
    %c0_i32_0 = arith.constant 0 : i32
    %c0_i32_1 = arith.constant 0 : i32
    return %arg0, %c0_i32, %c0_i32_0 : i32, i32, i32
  }
  func.func @transform_4(%arg0: i32) -> (i32, i32, i32, i32) {
    %c0_i32 = arith.constant 0 : i32
    %c0_i32_0 = arith.constant 0 : i32
    %c0_i32_1 = arith.constant 0 : i32
    %c0_i32_2 = arith.constant 0 : i32
    return %arg0, %c0_i32, %c0_i32_0, %c0_i32_1 : i32, i32, i32, i32
  }
}

</mosaic_0001>

<llo_original>
// kernel: heads_forward.1
$region0: #{heads_forward.1}
  #allocation0 [shape = 'u32[]', space=smem, size = 0x4, offset = 0x4, fixed_abs, tag = 'smem constant byte address 0x4 - core index']
  #allocation1 [shape = 'u32[144,128]{1,0:T(1,128)}', space=vmem, size = 0x12000, scoped, tag = 'internal scratch']
  %s0 = inlined_call_operand.vmem [shape: f32[2,8,64], index: 0, kind: input, shape index: {}]
  %s1 = inlined_call_operand.vmem [shape: f32[1,64,16], index: 1, kind: input, shape index: {}]
  %s2 = inlined_call_operand.vmem [shape: f32[1,64,16], index: 2, kind: input, shape index: {}]
  %s3 = inlined_call_operand.vmem [shape: f32[1,64,16], index: 3, kind: input, shape index: {}]
  %s4 = inlined_call_operand.hbm [shape: f32[1,2,8,16], index: 4, kind: output, shape index: {}]
  %s5 = sld [smem:[#allocation0]]
  $region26: #{heads_forward.1} parent=0
    _
  %s7 = ssub.s32 1, %s5
  %s8 = scalar_select 0, %s7, %s5
  $region1: #{heads_forward.1} parent=0
    #allocation2 [shape = 'u8[8192]{0}', space=vmem, size = 0x2000, scoped, tag = 'output window, operand 0, single buffered']
    #allocation3 [shape = 's32[1]{0}', space=sflag, size = 0x4, scoped, tag = 'scoped memory for heads_forward.1']
    %9 = vsyncpa [#allocation3], 0
    // Predicated region
    $region2: #{heads_forward.1} parent=1 // pred_check
      _
    $region3: #{heads_forward.1} parent=1 // pred_check_branch
      %11 = sbr.rel (0) target = $region5
    $region4: #{heads_forward.1} parent=1 // pred_region
      _
    $region5: #{heads_forward.1} parent=1 // pred_fallthru
      _
    // Predicated region
    $region6: #{heads_forward.1} parent=1 // pred_check
      _
    $region7: #{heads_forward.1} parent=1 // pred_check_branch
      %13 = sbr.rel (0) target = $region9
    $region8: #{heads_forward.1} parent=1 // pred_region
      _
    $region9: #{heads_forward.1} parent=1 // pred_fallthru
      _
    // Predicated region
    $region10: #{heads_forward.1} parent=1 // pred_check
      _
    $region11: #{heads_forward.1} parent=1 // pred_check_branch
      %15 = sbr.rel (0) target = $region13
    $region12: #{heads_forward.1} parent=1 // pred_region
      _
    $region13: #{heads_forward.1} parent=1 // pred_fallthru
      _
    // Predicated region
    $region14: #{heads_forward.1} parent=1 // pred_check
      _
    $region15: #{heads_forward.1} parent=1 // pred_check_branch
      %17 = sbr.rel (0) target = $region17
    $region16: #{heads_forward.1} parent=1 // pred_region
      _
    $region17: #{heads_forward.1} parent=1 // pred_fallthru
      _
    %v18 = vld [vmem:[%s0] sm:$0xff]
    %v19 = vld [vmem:[%s0 + $0x8] sm:$0xff]
    %v20 = vld [vmem:[%s1] sm:$0xff]
    %v21 = vld [vmem:[%s1 + $0x8] sm:$0xff]
    %v22 = vld [vmem:[%s1 + $0x10] sm:$0xff]
    %v23 = vld [vmem:[%s1 + $0x18] sm:$0xff]
    %v24 = vld [vmem:[%s1 + $0x20] sm:$0xff]
    %v25 = vld [vmem:[%s1 + $0x28] sm:$0xff]
    %v26 = vld [vmem:[%s1 + $0x30] sm:$0xff]
    %v27 = vld [vmem:[%s1 + $0x38] sm:$0xff]
    %vm28 = vcmask 523264
    %v30 = vsel %vm28, %v18, 0
    %v33 = vsel %vm28, %v19, 0
    %35 = vmatprep.subr.mxu0 0.0
    %36 = vmatpush1.msra.mxu0 %v20
    %37 = vmatprep.subr.mxu0 0.0
    %38 = vmatpush1.msra.mxu0 %v21
    %39 = vmatprep.subr.mxu0 0.0
    %40 = vmatpush1.msra.mxu0 %v22
    %41 = vmatprep.subr.mxu0 0.0
    %42 = vmatpush1.msra.mxu0 %v23
    %43 = vmatprep.subr.mxu0 0.0
    %44 = vmatpush1.msra.mxu0 %v24
    %45 = vmatprep.subr.mxu0 0.0
    %46 = vmatpush1.msra.mxu0 %v25
    %47 = vmatprep.subr.mxu0 0.0
    %48 = vmatpush1.msra.mxu0 %v26
    %49 = vmatprep.subr.mxu0 0.0
    %50 = vmatpush1.msra.mxu0 %v27
    %51 = vmatprep.subr.mxu0 0.0
    %52 = vmatpush1.msra.mxu0 0.0
    %53 = vmatprep.subr.mxu0 0.0
    %54 = vmatpush1.msra.mxu0 0.0
    %55 = vmatprep.subr.mxu0 0.0
    %56 = vmatpush1.msra.mxu0 0.0
    %57 = vmatprep.subr.mxu0 0.0
    %58 = vmatpush1.msra.mxu0 0.0
    %59 = vmatprep.subr.mxu0 0.0
    %60 = vmatpush1.msra.mxu0 0.0
    %61 = vmatprep.subr.mxu0 0.0
    %62 = vmatpush1.msra.mxu0 0.0
    %63 = vmatprep.subr.mxu0 0.0
    %64 = vmatpush1.msra.mxu0 0.0
    %65 = vmatprep.subr.mxu0 0.0
    %66 = vmatpush1.msra.mxu0 0.0
    %67 = vmatprep.subr.mxu0 0.0
    %68 = vmatpush1.msra.mxu0 0.0
    %69 = vmatprep.subr.mxu0 0.0
    %70 = vmatpush1.msra.mxu0 0.0
    %71 = vmatprep.subr.mxu0 0.0
    %72 = vmatpush1.msra.mxu0 0.0
    %73 = vmatprep.subr.mxu0 0.0
    %74 = vmatpush1.msra.mxu0 0.0
    %75 = vmatprep.subr.mxu0 0.0
    %76 = vmatpush1.msra.mxu0 0.0
    %77 = vmatprep.subr.mxu0 0.0
    %78 = vmatpush1.msra.mxu0 0.0
    %79 = vmatprep.subr.mxu0 0.0
    %80 = vmatpush1.msra.mxu0 0.0
    %81 = vmatprep.subr.mxu0 0.0
    %82 = vmatpush1.msra.mxu0 0.0
    %83 = vmatprep.subr.mxu0 0.0
    %84 = vmatpush1.msra.mxu0 0.0
    %85 = vmatprep.subr.mxu0 0.0
    %86 = vmatpush1.msra.mxu0 0.0
    %87 = vmatprep.subr.mxu0 0.0
    %88 = vmatpush1.msra.mxu0 0.0
    %89 = vmatprep.subr.mxu0 0.0
    %90 = vmatpush1.msra.mxu0 0.0
    %91 = vmatprep.subr.mxu0 0.0
    %92 = vmatpush1.msra.mxu0 0.0
    %93 = vmatprep.subr.mxu0 0.0
    %94 = vmatpush1.msra.mxu0 0.0
    %95 = vmatprep.subr.mxu0 0.0
    %96 = vmatpush1.msra.mxu0 0.0
    %97 = vmatprep.subr.mxu0 0.0
    %98 = vmatpush1.msra.mxu0 0.0
    %99 = vmatprep.mubr.f32.mxu0 0.0
    %100 = vmatmul.mubr.f32.gmra.mrb[0].mxu0 %v30
    %v101 = vpop.f32.mrb[0].mxu0
    %v102 = vadd.f32 0.0, %v101
    %v103 = vpop.f32.mrb[0].mxu0
    %104 = vmatprep.mubr.f32.mxu0 0.0
    %105 = vmatmul.mubr.f32.gmra.mrb[0].mxu0 %v33
    %v106 = vpop.f32.mrb[0].mxu0
    %v107 = vadd.f32 0.0, %v106
    %v108 = vpop.f32.mrb[0].mxu0
    %109 = vdwg.mxu0
    %v110 = vld [vmem:[%s2] sm:$0xff]
    %v111 = vld [vmem:[%s2 + $0x8] sm:$0xff]
    %v112 = vld [vmem:[%s2 + $0x10] sm:$0xff]
    %v113 = vld [vmem:[%s2 + $0x18] sm:$0xff]
    %v114 = vld [vmem:[%s2 + $0x20] sm:$0xff]
    %v115 = vld [vmem:[%s2 + $0x28] sm:$0xff]
    %v116 = vld [vmem:[%s2 + $0x30] sm:$0xff]
    %v117 = vld [vmem:[%s2 + $0x38] sm:$0xff]
    %118 = vmatprep.subr.mxu0 0.0
    %119 = vmatpush1.msra.mxu0 %v110
    %120 = vmatprep.subr.mxu0 0.0
    %121 = vmatpush1.msra.mxu0 %v111
    %122 = vmatprep.subr.mxu0 0.0
    %123 = vmatpush1.msra.mxu0 %v112
    %124 = vmatprep.subr.mxu0 0.0
    %125 = vmatpush1.msra.mxu0 %v113
    %126 = vmatprep.subr.mxu0 0.0
    %127 = vmatpush1.msra.mxu0 %v114
    %128 = vmatprep.subr.mxu0 0.0
    %129 = vmatpush1.msra.mxu0 %v115
    %130 = vmatprep.subr.mxu0 0.0
    %131 = vmatpush1.msra.mxu0 %v116
    %132 = vmatprep.subr.mxu0 0.0
    %133 = vmatpush1.msra.mxu0 %v117
    %134 = vmatprep.subr.mxu0 0.0
    %135 = vmatpush1.msra.mxu0 0.0
    %136 = vmatprep.subr.mxu0 0.0
    %137 = vmatpush1.msra.mxu0 0.0
    %138 = vmatprep.subr.mxu0 0.0
    %139 = vmatpush1.msra.mxu0 0.0
    %140 = vmatprep.subr.mxu0 0.0
    %141 = vmatpush1.msra.mxu0 0.0
    %142 = vmatprep.subr.mxu0 0.0
    %143 = vmatpush1.msra.mxu0 0.0
    %144 = vmatprep.subr.mxu0 0.0
    %145 = vmatpush1.msra.mxu0 0.0
    %146 = vmatprep.subr.mxu0 0.0
    %147 = vmatpush1.msra.mxu0 0.0
    %148 = vmatprep.subr.mxu0 0.0
    %149 = vmatpush1.msra.mxu0 0.0
    %150 = vmatprep.subr.mxu0 0.0
    %151 = vmatpush1.msra.mxu0 0.0
    %152 = vmatprep.subr.mxu0 0.0
    %153 = vmatpush1.msra.mxu0 0.0
    %154 = vmatprep.subr.mxu0 0.0
    %155 = vmatpush1.msra.mxu0 0.0
    %156 = vmatprep.subr.mxu0 0.0
    %157 = vmatpush1.msra.mxu0 0.0
    %158 = vmatprep.subr.mxu0 0.0
    %159 = vmatpush1.msra.mxu0 0.0
    %160 = vmatprep.subr.mxu0 0.0
    %161 = vmatpush1.msra.mxu0 0.0
    %162 = vmatprep.subr.mxu0 0.0
    %163 = vmatpush1.msra.mxu0 0.0
    %164 = vmatprep.subr.mxu0 0.0
    %165 = vmatpush1.msra.mxu0 0.0
    %166 = vmatprep.subr.mxu0 0.0
    %167 = vmatpush1.msra.mxu0 0.0
    %168 = vmatprep.subr.mxu0 0.0
    %169 = vmatpush1.msra.mxu0 0.0
    %170 = vmatprep.subr.mxu0 0.0
    %171 = vmatpush1.msra.mxu0 0.0
    %172 = vmatprep.subr.mxu0 0.0
    %173 = vmatpush1.msra.mxu0 0.0
    %174 = vmatprep.subr.mxu0 0.0
    %175 = vmatpush1.msra.mxu0 0.0
    %176 = vmatprep.subr.mxu0 0.0
    %177 = vmatpush1.msra.mxu0 0.0
    %178 = vmatprep.subr.mxu0 0.0
    %179 = vmatpush1.msra.mxu0 0.0
    %180 = vmatprep.subr.mxu0 0.0
    %181 = vmatpush1.msra.mxu0 0.0
    %182 = vmatprep.mubr.f32.mxu0 0.0
    %183 = vmatmul.mubr.f32.gmra.mrb[0].mxu0 %v30
    %v184 = vpop.f32.mrb[0].mxu0
    %v185 = vadd.f32 0.0, %v184
    %v186 = vpop.f32.mrb[0].mxu0
    %187 = vmatprep.mubr.f32.mxu0 0.0
    %188 = vmatmul.mubr.f32.gmra.mrb[0].mxu0 %v33
    %v189 = vpop.f32.mrb[0].mxu0
    %v190 = vadd.f32 0.0, %v189
    %v191 = vpop.f32.mrb[0].mxu0
    %192 = vdwg.mxu0
    %v193 = vld [vmem:[%s3] sm:$0xff]
    %v194 = vld [vmem:[%s3 + $0x8] sm:$0xff]
    %v195 = vld [vmem:[%s3 + $0x10] sm:$0xff]
    %v196 = vld [vmem:[%s3 + $0x18] sm:$0xff]
    %v197 = vld [vmem:[%s3 + $0x20] sm:$0xff]
    %v198 = vld [vmem:[%s3 + $0x28] sm:$0xff]
    %v199 = vld [vmem:[%s3 + $0x30] sm:$0xff]
    %v200 = vld [vmem:[%s3 + $0x38] sm:$0xff]
    %201 = vmatprep.subr.mxu0 0.0
    %202 = vmatpush1.msra.mxu0 %v193
    %203 = vmatprep.subr.mxu0 0.0
    %204 = vmatpush1.msra.mxu0 %v194
    %205 = vmatprep.subr.mxu0 0.0
    %206 = vmatpush1.msra.mxu0 %v195
    %207 = vmatprep.subr.mxu0 0.0
    %208 = vmatpush1.msra.mxu0 %v196
    %209 = vmatprep.subr.mxu0 0.0
    %210 = vmatpush1.msra.mxu0 %v197
    %211 = vmatprep.subr.mxu0 0.0
    %212 = vmatpush1.msra.mxu0 %v198
    %213 = vmatprep.subr.mxu0 0.0
    %214 = vmatpush1.msra.mxu0 %v199
    %215 = vmatprep.subr.mxu0 0.0
    %216 = vmatpush1.msra.mxu0 %v200
    %217 = vmatprep.subr.mxu0 0.0
    %218 = vmatpush1.msra.mxu0 0.0
    %219 = vmatprep.subr.mxu0 0.0
    %220 = vmatpush1.msra.mxu0 0.0
    %221 = vmatprep.subr.mxu0 0.0
    %222 = vmatpush1.msra.mxu0 0.0
    %223 = vmatprep.subr.mxu0 0.0
    %224 = vmatpush1.msra.mxu0 0.0
    %225 = vmatprep.subr.mxu0 0.0
    %226 = vmatpush1.msra.mxu0 0.0
    %227 = vmatprep.subr.mxu0 0.0
    %228 = vmatpush1.msra.mxu0 0.0
    %229 = vmatprep.subr.mxu0 0.0
    %230 = vmatpush1.msra.mxu0 0.0
    %231 = vmatprep.subr.mxu0 0.0
    %232 = vmatpush1.msra.mxu0 0.0
    %233 = vmatprep.subr.mxu0 0.0
    %234 = vmatpush1.msra.mxu0 0.0
    %235 = vmatprep.subr.mxu0 0.0
    %236 = vmatpush1.msra.mxu0 0.0
    %237 = vmatprep.subr.mxu0 0.0
    %238 = vmatpush1.msra.mxu0 0.0
    %239 = vmatprep.subr.mxu0 0.0
    %240 = vmatpush1.msra.mxu0 0.0
    %241 = vmatprep.subr.mxu0 0.0
    %242 = vmatpush1.msra.mxu0 0.0
    %243 = vmatprep.subr.mxu0 0.0
    %244 = vmatpush1.msra.mxu0 0.0
    %245 = vmatprep.subr.mxu0 0.0
    %246 = vmatpush1.msra.mxu0 0.0
    %247 = vmatprep.subr.mxu0 0.0
    %248 = vmatpush1.msra.mxu0 0.0
    %249 = vmatprep.subr.mxu0 0.0
    %250 = vmatpush1.msra.mxu0 0.0
    %251 = vmatprep.subr.mxu0 0.0
    %252 = vmatpush1.msra.mxu0 0.0
    %253 = vmatprep.subr.mxu0 0.0
    %254 = vmatpush1.msra.mxu0 0.0
    %255 = vmatprep.subr.mxu0 0.0
    %256 = vmatpush1.msra.mxu0 0.0
    %257 = vmatprep.subr.mxu0 0.0
    %258 = vmatpush1.msra.mxu0 0.0
    %259 = vmatprep.subr.mxu0 0.0
    %260 = vmatpush1.msra.mxu0 0.0
    %261 = vmatprep.subr.mxu0 0.0
    %262 = vmatpush1.msra.mxu0 0.0
    %263 = vmatprep.subr.mxu0 0.0
    %264 = vmatpush1.msra.mxu0 0.0
    %265 = vmatprep.mubr.f32.mxu0 0.0
    %266 = vmatmul.mubr.f32.gmra.mrb[0].mxu0 %v30
    %v267 = vpop.f32.mrb[0].mxu0
    %v268 = vadd.f32 0.0, %v267
    %v269 = vpop.f32.mrb[0].mxu0
    %270 = vmatprep.mubr.f32.mxu0 0.0
    %271 = vmatmul.mubr.f32.gmra.mrb[0].mxu0 %v33
    %v272 = vpop.f32.mrb[0].mxu0
    %v273 = vadd.f32 0.0, %v272
    %v274 = vpop.f32.mrb[0].mxu0
    %275 = vdwg.mxu0
    %vm276 = vcmask 130048
    %v278 = vsel %vm276, %v102, 0
    %v281 = vsel %vm276, %v185, 0
    %283 = vmatprep.subr.mxu0 0.0
    %284 = vmatpush1.xpose.msra.mxu0 %v281
    %285 = vmatprep.subr.mxu0 0.0
    %286 = vmatpush1.xpose.msra.mxu0 0.0
    %287 = vmatprep.subr.mxu0 0.0
    %288 = vmatpush1.xpose.msra.mxu0 0.0
    %289 = vmatprep.subr.mxu0 0.0
    %290 = vmatpush1.xpose.msra.mxu0 0.0
    %291 = vmatprep.subr.mxu0 0.0
    %292 = vmatpush1.xpose.msra.mxu0 0.0
    %293 = vmatprep.subr.mxu0 0.0
    %294 = vmatpush1.xpose.msra.mxu0 0.0
    %295 = vmatprep.subr.mxu0 0.0
    %296 = vmatpush1.xpose.msra.mxu0 0.0
    %297 = vmatprep.subr.mxu0 0.0
    %298 = vmatpush1.xpose.msra.mxu0 0.0
    %299 = vmatprep.subr.mxu0 0.0
    %300 = vmatpush1.xpose.msra.mxu0 0.0
    %301 = vmatprep.subr.mxu0 0.0
    %302 = vmatpush1.xpose.msra.mxu0 0.0
    %303 = vmatprep.subr.mxu0 0.0
    %304 = vmatpush1.xpose.msra.mxu0 0.0
    %305 = vmatprep.subr.mxu0 0.0
    %306 = vmatpush1.xpose.msra.mxu0 0.0
    %307 = vmatprep.subr.mxu0 0.0
    %308 = vmatpush1.xpose.msra.mxu0 0.0
    %309 = vmatprep.subr.mxu0 0.0
    %310 = vmatpush1.xpose.msra.mxu0 0.0
    %311 = vmatprep.subr.mxu0 0.0
    %312 = vmatpush1.xpose.msra.mxu0 0.0
    %313 = vmatprep.subr.mxu0 0.0
    %314 = vmatpush1.xpose.msra.mxu0 0.0
    %315 = vmatprep.subr.mxu0 0.0
    %316 = vmatpush1.xpose.msra.mxu0 0.0
    %317 = vmatprep.subr.mxu0 0.0
    %318 = vmatpush1.xpose.msra.mxu0 0.0
    %319 = vmatprep.subr.mxu0 0.0
    %320 = vmatpush1.xpose.msra.mxu0 0.0
    %321 = vmatprep.subr.mxu0 0.0
    %322 = vmatpush1.xpose.msra.mxu0 0.0
    %323 = vmatprep.subr.mxu0 0.0
    %324 = vmatpush1.xpose.msra.mxu0 0.0
    %325 = vmatprep.subr.mxu0 0.0
    %326 = vmatpush1.xpose.msra.mxu0 0.0
    %327 = vmatprep.subr.mxu0 0.0
    %328 = vmatpush1.xpose.msra.mxu0 0.0
    %329 = vmatprep.subr.mxu0 0.0
    %330 = vmatpush1.xpose.msra.mxu0 0.0
    %331 = vmatprep.subr.mxu0 0.0
    %332 = vmatpush1.xpose.msra.mxu0 0.0
    %333 = vmatprep.subr.mxu0 0.0
    %334 = vmatpush1.xpose.msra.mxu0 0.0
    %335 = vmatprep.subr.mxu0 0.0
    %336 = vmatpush1.xpose.msra.mxu0 0.0
    %337 = vmatprep.subr.mxu0 0.0
    %338 = vmatpush1.xpose.msra.mxu0 0.0
    %339 = vmatprep.subr.mxu0 0.0
    %340 = vmatpush1.xpose.msra.mxu0 0.0
    %341 = vmatprep.subr.mxu0 0.0
    %342 = vmatpush1.xpose.msra.mxu0 0.0
    %343 = vmatprep.subr.mxu0 0.0
    %344 = vmatpush1.xpose.msra.mxu0 0.0
    %345 = vmatprep.subr.mxu0 0.0
    %346 = vmatpush1.xpose.msra.mxu0 0.0
    %347 = vmatprep.mubr.f32.mxu0 0.0
    %348 = vmatmul.mubr.f32.gmra.mrb[0].mxu0 %v278
    %v349 = vpop.f32.mrb[0].mxu0
    %v350 = vadd.f32 0.0, %v349
    %v351 = vpop.f32.mrb[0].mxu0
    %352 = vdwg.mxu0
    %v354 = vsel %vm276, %v107, 0
    %v357 = vsel %vm276, %v190, 0
    %359 = vmatprep.subr.mxu0 0.0
    %360 = vmatpush1.xpose.msra.mxu0 %v357
    %361 = vmatprep.subr.mxu0 0.0
    %362 = vmatpush1.xpose.msra.mxu0 0.0
    %363 = vmatprep.subr.mxu0 0.0
    %364 = vmatpush1.xpose.msra.mxu0 0.0
    %365 = vmatprep.subr.mxu0 0.0
    %366 = vmatpush1.xpose.msra.mxu0 0.0
    %367 = vmatprep.subr.mxu0 0.0
    %368 = vmatpush1.xpose.msra.mxu0 0.0
    %369 = vmatprep.subr.mxu0 0.0
    %370 = vmatpush1.xpose.msra.mxu0 0.0
    %371 = vmatprep.subr.mxu0 0.0
    %372 = vmatpush1.xpose.msra.mxu0 0.0
    %373 = vmatprep.subr.mxu0 0.0
    %374 = vmatpush1.xpose.msra.mxu0 0.0
    %375 = vmatprep.subr.mxu0 0.0
    %376 = vmatpush1.xpose.msra.mxu0 0.0
    %377 = vmatprep.subr.mxu0 0.0
    %378 = vmatpush1.xpose.msra.mxu0 0.0
    %379 = vmatprep.subr.mxu0 0.0
    %380 = vmatpush1.xpose.msra.mxu0 0.0
    %381 = vmatprep.subr.mxu0 0.0
    %382 = vmatpush1.xpose.msra.mxu0 0.0
    %383 = vmatprep.subr.mxu0 0.0
    %384 = vmatpush1.xpose.msra.mxu0 0.0
    %385 = vmatprep.subr.mxu0 0.0
    %386 = vmatpush1.xpose.msra.mxu0 0.0
    %387 = vmatprep.subr.mxu0 0.0
    %388 = vmatpush1.xpose.msra.mxu0 0.0
    %389 = vmatprep.subr.mxu0 0.0
    %390 = vmatpush1.xpose.msra.mxu0 0.0
    %391 = vmatprep.subr.mxu0 0.0
    %392 = vmatpush1.xpose.msra.mxu0 0.0
    %393 = vmatprep.subr.mxu0 0.0
    %394 = vmatpush1.xpose.msra.mxu0 0.0
    %395 = vmatprep.subr.mxu0 0.0
    %396 = vmatpush1.xpose.msra.mxu0 0.0
    %397 = vmatprep.subr.mxu0 0.0
    %398 = vmatpush1.xpose.msra.mxu0 0.0
    %399 = vmatprep.subr.mxu0 0.0
    %400 = vmatpush1.xpose.msra.mxu0 0.0
    %401 = vmatprep.subr.mxu0 0.0
    %402 = vmatpush1.xpose.msra.mxu0 0.0
    %403 = vmatprep.subr.mxu0 0.0
    %404 = vmatpush1.xpose.msra.mxu0 0.0
    %405 = vmatprep.subr.mxu0 0.0
    %406 = vmatpush1.xpose.msra.mxu0 0.0
    %407 = vmatprep.subr.mxu0 0.0
    %408 = vmatpush1.xpose.msra.mxu0 0.0
    %409 = vmatprep.subr.mxu0 0.0
    %410 = vmatpush1.xpose.msra.mxu0 0.0
    %411 = vmatprep.subr.mxu0 0.0
    %412 = vmatpush1.xpose.msra.mxu0 0.0
    %413 = vmatprep.subr.mxu0 0.0
    %414 = vmatpush1.xpose.msra.mxu0 0.0
    %415 = vmatprep.subr.mxu0 0.0
    %416 = vmatpush1.xpose.msra.mxu0 0.0
    %417 = vmatprep.subr.mxu0 0.0
    %418 = vmatpush1.xpose.msra.mxu0 0.0
    %419 = vmatprep.subr.mxu0 0.0
    %420 = vmatpush1.xpose.msra.mxu0 0.0
    %421 = vmatprep.subr.mxu0 0.0
    %422 = vmatpush1.xpose.msra.mxu0 0.0
    %423 = vmatprep.mubr.f32.mxu0 0.0
    %424 = vmatmul.mubr.f32.gmra.mrb[0].mxu0 %v354
    %v425 = vpop.f32.mrb[0].mxu0
    %v426 = vadd.f32 0.0, %v425
    %v427 = vpop.f32.mrb[0].mxu0
    %428 = vdwg.mxu0
    %vm429 = vcmask 64512
    %v430 = vsel %vm429, %v350, -inf
    %431 = vmax.xlane.f32.xlu0 %v430
    %v432 = vpop.xlane.xlu0 %431
    %v433 = vsel %vm429, %v426, -inf
    %434 = vmax.xlane.f32.xlu0 %v433
    %v435 = vpop.xlane.xlu0 %434
    %v436 = vsub.f32 %v350, %v432
    %v437 = vsub.f32 %v426, %v435
    %v438 = vmul.f32 %v436, 1.442695
    %v439 = vpow.pop %v438
    %v440 = vmul.f32 %v437, 1.442695
    %v441 = vpow.pop %v440
    %v442 = vsel %vm429, %v439, 0.0
    %443 = vadd.xlane.f32.xlu0 %v442
    %v444 = vpop.xlane.xlu0 %443
    %v445 = vsel %vm429, %v441, 0.0
    %446 = vadd.xlane.f32.xlu0 %v445
    %v447 = vpop.xlane.xlu0 %446
    %v448 = vrcp.pop %v444
    %v449 = vrcp.pop %v447
    %v451 = vsel %vm429, %v439, 0
    %453 = vmatprep.subr.mxu0 0.0
    %454 = vmatpush1.msra.mxu0 %v268
    %455 = vmatprep.subr.mxu0 0.0
    %456 = vmatpush1.msra.mxu0 0.0
    %457 = vmatprep.subr.mxu0 0.0
    %458 = vmatpush1.msra.mxu0 0.0
    %459 = vmatprep.subr.mxu0 0.0
    %460 = vmatpush1.msra.mxu0 0.0
    %461 = vmatprep.subr.mxu0 0.0
    %462 = vmatpush1.msra.mxu0 0.0
    %463 = vmatprep.subr.mxu0 0.0
    %464 = vmatpush1.msra.mxu0 0.0
    %465 = vmatprep.subr.mxu0 0.0
    %466 = vmatpush1.msra.mxu0 0.0
    %467 = vmatprep.subr.mxu0 0.0
    %468 = vmatpush1.msra.mxu0 0.0
    %469 = vmatprep.subr.mxu0 0.0
    %470 = vmatpush1.msra.mxu0 0.0
    %471 = vmatprep.subr.mxu0 0.0
    %472 = vmatpush1.msra.mxu0 0.0
    %473 = vmatprep.subr.mxu0 0.0
    %474 = vmatpush1.msra.mxu0 0.0
    %475 = vmatprep.subr.mxu0 0.0
    %476 = vmatpush1.msra.mxu0 0.0
    %477 = vmatprep.subr.mxu0 0.0
    %478 = vmatpush1.msra.mxu0 0.0
    %479 = vmatprep.subr.mxu0 0.0
    %480 = vmatpush1.msra.mxu0 0.0
    %481 = vmatprep.subr.mxu0 0.0
    %482 = vmatpush1.msra.mxu0 0.0
    %483 = vmatprep.subr.mxu0 0.0
    %484 = vmatpush1.msra.mxu0 0.0
    %485 = vmatprep.subr.mxu0 0.0
    %486 = vmatpush1.msra.mxu0 0.0
    %487 = vmatprep.subr.mxu0 0.0
    %488 = vmatpush1.msra.mxu0 0.0
    %489 = vmatprep.subr.mxu0 0.0
    %490 = vmatpush1.msra.mxu0 0.0
    %491 = vmatprep.subr.mxu0 0.0
    %492 = vmatpush1.msra.mxu0 0.0
    %493 = vmatprep.subr.mxu0 0.0
    %494 = vmatpush1.msra.mxu0 0.0
    %495 = vmatprep.subr.mxu0 0.0
    %496 = vmatpush1.msra.mxu0 0.0
    %497 = vmatprep.subr.mxu0 0.0
    %498 = vmatpush1.msra.mxu0 0.0
    %499 = vmatprep.subr.mxu0 0.0
    %500 = vmatpush1.msra.mxu0 0.0
    %501 = vmatprep.subr.mxu0 0.0
    %502 = vmatpush1.msra.mxu0 0.0
    %503 = vmatprep.subr.mxu0 0.0
    %504 = vmatpush1.msra.mxu0 0.0
    %505 = vmatprep.subr.mxu0 0.0
    %506 = vmatpush1.msra.mxu0 0.0
    %507 = vmatprep.subr.mxu0 0.0
    %508 = vmatpush1.msra.mxu0 0.0
    %509 = vmatprep.subr.mxu0 0.0
    %510 = vmatpush1.msra.mxu0 0.0
    %511 = vmatprep.subr.mxu0 0.0
    %512 = vmatpush1.msra.mxu0 0.0
    %513 = vmatprep.subr.mxu0 0.0
    %514 = vmatpush1.msra.mxu0 0.0
    %515 = vmatprep.subr.mxu0 0.0
    %516 = vmatpush1.msra.mxu0 0.0
    %517 = vmatprep.mubr.f32.mxu0 0.0
    %518 = vmatmul.mubr.f32.gmra.mrb[0].mxu0 %v451
    %v519 = vpop.f32.mrb[0].mxu0
    %v520 = vadd.f32 0.0, %v519
    %v521 = vpop.f32.mrb[0].mxu0
    %522 = vdwg.mxu0
    %v524 = vsel %vm429, %v441, 0
    %526 = vmatprep.subr.mxu0 0.0
    %527 = vmatpush1.msra.mxu0 %v273
    %528 = vmatprep.subr.mxu0 0.0
    %529 = vmatpush1.msra.mxu0 0.0
    %530 = vmatprep.subr.mxu0 0.0
    %531 = vmatpush1.msra.mxu0 0.0
    %532 = vmatprep.subr.mxu0 0.0
    %533 = vmatpush1.msra.mxu0 0.0
    %534 = vmatprep.subr.mxu0 0.0
    %535 = vmatpush1.msra.mxu0 0.0
    %536 = vmatprep.subr.mxu0 0.0
    %537 = vmatpush1.msra.mxu0 0.0
    %538 = vmatprep.subr.mxu0 0.0
    %539 = vmatpush1.msra.mxu0 0.0
    %540 = vmatprep.subr.mxu0 0.0
    %541 = vmatpush1.msra.mxu0 0.0
    %542 = vmatprep.subr.mxu0 0.0
    %543 = vmatpush1.msra.mxu0 0.0
    %544 = vmatprep.subr.mxu0 0.0
    %545 = vmatpush1.msra.mxu0 0.0
    %546 = vmatprep.subr.mxu0 0.0
    %547 = vmatpush1.msra.mxu0 0.0
    %548 = vmatprep.subr.mxu0 0.0
    %549 = vmatpush1.msra.mxu0 0.0
    %550 = vmatprep.subr.mxu0 0.0
    %551 = vmatpush1.msra.mxu0 0.0
    %552 = vmatprep.subr.mxu0 0.0
    %553 = vmatpush1.msra.mxu0 0.0
    %554 = vmatprep.subr.mxu0 0.0
    %555 = vmatpush1.msra.mxu0 0.0
    %556 = vmatprep.subr.mxu0 0.0
    %557 = vmatpush1.msra.mxu0 0.0
    %558 = vmatprep.subr.mxu0 0.0
    %559 = vmatpush1.msra.mxu0 0.0
    %560 = vmatprep.subr.mxu0 0.0
    %561 = vmatpush1.msra.mxu0 0.0
    %562 = vmatprep.subr.mxu0 0.0
    %563 = vmatpush1.msra.mxu0 0.0
    %564 = vmatprep.subr.mxu0 0.0
    %565 = vmatpush1.msra.mxu0 0.0
    %566 = vmatprep.subr.mxu0 0.0
    %567 = vmatpush1.msra.mxu0 0.0
    %568 = vmatprep.subr.mxu0 0.0
    %569 = vmatpush1.msra.mxu0 0.0
    %570 = vmatprep.subr.mxu0 0.0
    %571 = vmatpush1.msra.mxu0 0.0
    %572 = vmatprep.subr.mxu0 0.0
    %573 = vmatpush1.msra.mxu0 0.0
    %574 = vmatprep.subr.mxu0 0.0
    %575 = vmatpush1.msra.mxu0 0.0
    %576 = vmatprep.subr.mxu0 0.0
    %577 = vmatpush1.msra.mxu0 0.0
    %578 = vmatprep.subr.mxu0 0.0
    %579 = vmatpush1.msra.mxu0 0.0
    %580 = vmatprep.subr.mxu0 0.0
    %581 = vmatpush1.msra.mxu0 0.0
    %582 = vmatprep.subr.mxu0 0.0
    %583 = vmatpush1.msra.mxu0 0.0
    %584 = vmatprep.subr.mxu0 0.0
    %585 = vmatpush1.msra.mxu0 0.0
    %586 = vmatprep.subr.mxu0 0.0
    %587 = vmatpush1.msra.mxu0 0.0
    %588 = vmatprep.subr.mxu0 0.0
    %589 = vmatpush1.msra.mxu0 0.0
    %590 = vmatprep.mubr.f32.mxu0 0.0
    %591 = vmatmul.mubr.f32.gmra.mrb[0].mxu0 %v524
    %v592 = vpop.f32.mrb[0].mxu0
    %v593 = vadd.f32 0.0, %v592
    %v594 = vpop.f32.mrb[0].mxu0
    %595 = vdwg.mxu0
    %v596 = vmul.f32 %v520, %v448
    %v597 = vmul.f32 %v593, %v449
    %598 = vst.msk [vmem:[#allocation2] sm:$0xff] %vm276, %v596
    %599 = vst.msk [vmem:[#allocation2 + $0x8] sm:$0xff] %vm276, %v597
    // Predicated region
    $region18: #{heads_forward.1} parent=1 // pred_check
      _
    $region19: #{heads_forward.1} parent=1 // pred_check_branch
      %601 = sbr.rel (0) target = $region21
    $region20: #{heads_forward.1} parent=1 // pred_region
      %s603 = ssub.s32 256, 256
      %604 = vsyncadd [#allocation3], %s603
      %s605 = sshll.u32 [#allocation2], 4
      %s606 = int_to_ptr.vmem [resolvable:$true] %s605
      %611 = dma.vmem_to_hbm [thread:$0]  %s606, 256, %s4, [#allocation3], 128, 128, 8
    $region21: #{heads_forward.1} parent=1 // pred_fallthru
      _
    // Predicated region
    $region22: #{heads_forward.1} parent=1 // pred_check
      _
    $region23: #{heads_forward.1} parent=1 // pred_check_branch
      %613 = sbr.rel (0) target = $region25
    $region24: #{heads_forward.1} parent=1 // pred_region
      %614 = dma.done [#allocation3], 256
    $region25: #{heads_forward.1} parent=1 // pred_fallthru
      _
    %615 = vsyncpa [#allocation3], 1

</llo_original>
